<compile_context>
chip_gen: v5e
topology: v5e:2x2
jax: 0.10.0
libtpu: 0.0.40
codegen_flags: <defaults>
</compile_context>

<pallas_src>
import jax
import jax.numpy as jnp
from jax.experimental import pallas as pl
from jax.experimental.pallas import tpu as pltpu


def _decoder_kernel(x_ref,
                    w1_ref, b1_ref,
                    w2_ref, b2_ref,
                    w3_ref, b3_ref,
                    w4_ref, b4_ref,
                    o_ref):
    # Activations: [features, lane_tile] — batch on lanes, everything f32.
    h = x_ref[...]

    def layer(w_ref, b_ref, h):
        # w: [out, in] (PyTorch layout), h: [in, tile] -> y: [out, tile]
        y = jnp.dot(w_ref[...], h, preferred_element_type=jnp.float32)
        # bias [out, 1] broadcasts across lanes; tanh is a single EUP push.
        return jnp.tanh(y + b_ref[...])

    h = layer(w1_ref, b1_ref, h)
    h = layer(w2_ref, b2_ref, h)
    h = layer(w3_ref, b3_ref, h)
    h = layer(w4_ref, b4_ref, h)

    o_ref[...] = h.astype(o_ref.dtype)


def _choose_tile(n128, max_lane_tile, desired_steps, min_step_tile):
    """Pick the lane tile (multiple of 128, or the whole padded batch)."""
    if n128 <= 2 * min_step_tile:
        # Small batch: one grid step over everything (1x fixed overhead).
        return n128
    # Large batch: aim for >= desired_steps steps (feeds both v7x TCs and
    # keeps DMA/compute overlap), but never below min_step_tile lanes per
    # step (per-step traffic floor) nor above max_lane_tile (VMEM cap).
    tile = pl.cdiv(pl.cdiv(n128, desired_steps), 128) * 128
    tile = max(min_step_tile, min(tile, max_lane_tile))
    return min(tile, n128)


def decoder_forward_fm(xt, params, *,
                       max_lane_tile=65536,
                       desired_steps=4,
                       min_step_tile=8192,
                       out_dtype=None):
    """Feature-major fused Decoder MLP.

    xt: [4, N] float32  ->  [d_out, N] (d_out = 2 * num_tx_ant).
    `min_step_tile` / `max_lane_tile` must be multiples of 128.
    """
    (w1, b1), (w2, b2), (w3, b3), (w4, b4) = params
    d_in, N = xt.shape
    d_out = w4.shape[0]

    n128 = pl.cdiv(max(N, 1), 128) * 128
    tile = _choose_tile(n128, max_lane_tile, desired_steps, min_step_tile)
    n_pad = pl.cdiv(n128, tile) * tile

    # Zero-pad the (tiny) feature-major input for the ragged last tile only.
    if n_pad != N:
        xt = jnp.pad(xt, ((0, 0), (0, n_pad - N)))

    # VMEM budget ~640 B/lane (double-buffered x/out blocks + live f32
    # intermediates), capped below v7x's 64 MiB physical VMEM.
    vmem_limit = int(min(48 * 1024 * 1024,
                         max(16 * 1024 * 1024, tile * 640)))

    out_dtype = xt.dtype if out_dtype is None else out_dtype

    def resident_spec(a):
        # Full block + constant index_map: tiny operand is DMA'd once and
        # stays resident in VMEM across all grid steps.
        return pl.BlockSpec(a.shape, lambda i: (0, 0))

    out_t = pl.pallas_call(
        _decoder_kernel,
        out_shape=jax.ShapeDtypeStruct((d_out, n_pad), out_dtype),
        grid=(n_pad // tile,),
        in_specs=[
            pl.BlockSpec((d_in, tile), lambda i: (0, i)),   # x tile (streamed)
            resident_spec(w1), resident_spec(b1),
            resident_spec(w2), resident_spec(b2),
            resident_spec(w3), resident_spec(b3),
            resident_spec(w4), resident_spec(b4),
        ],
        out_specs=pl.BlockSpec((d_out, tile), lambda i: (0, i)),
        compiler_params=pltpu.CompilerParams(
            dimension_semantics=("parallel",),
            vmem_limit_bytes=vmem_limit),
    )(xt, w1, b1, w2, b2, w3, b3, w4, b4)

    if n_pad != N:
        out_t = out_t[:, :N]
    return out_t


def decoder_forward(x, params, **kwargs):
    """PyTorch-layout wrapper: x [N, 4] -> [N, 2*num_tx_ant].

    Adds one input and one output transpose around the feature-major kernel;
    callers that can keep feature-major data should use decoder_forward_fm
    directly to avoid them.
    """
    out_t = decoder_forward_fm(x.T, params, **kwargs)
    return out_t.T


def init_decoder_params(key, num_tx_ant):
    """Deterministic synthetic init matching nn.Linear shapes.

    Weights in native PyTorch [out_features, in_features] layout; biases as
    [out_features, 1] columns (broadcast over the lane/batch axis).
    """
    dims = [4, 8, 16, 32, 2 * num_tx_ant]
    params = []
    for i in range(4):
        key, kw, kb = jax.random.split(key, 3)
        fan_in, fan_out = dims[i], dims[i + 1]
        bound = 1.0 / jnp.sqrt(fan_in)
        w = jax.random.uniform(kw, (fan_out, fan_in), jnp.float32, -bound, bound)
        b = jax.random.uniform(kb, (fan_out, 1), jnp.float32, -bound, bound)
        params.append((w, b))
    return params


def decoder_reference(x, params):
    """Pure-JAX reference of the same forward pass (PyTorch semantics)."""
    h = x
    for w, b in params:
        h = jnp.tanh(h @ w.T + b[:, 0])
    return h


if __name__ == "__main__":
    key = jax.random.PRNGKey(0)
    num_tx_ant = 4                     # output dim = 2 * num_tx_ant = 8
    N = 200                            # deliberately NOT a multiple of 128

    key, kx = jax.random.split(key)
    x = jax.random.normal(kx, (N, 4), jnp.float32)
    params = init_decoder_params(key, num_tx_ant)

    # Default (single grid step) path.
    out = decoder_forward(x, params)
    out = jax.block_until_ready(out)
    ref = decoder_reference(x, params)
    assert out.shape == (N, 2 * num_tx_ant)
    assert jnp.allclose(out, ref, atol=1e-5, rtol=1e-5), "mismatch vs reference"

    # Multi-step / ragged-tile path (forced small tiles so several grid steps
    # and input padding are exercised with small shapes).
    N2 = 300
    key, kx2 = jax.random.split(key)
    x2 = jax.random.normal(kx2, (N2, 4), jnp.float32)
    out2 = decoder_forward(x2, params, max_lane_tile=128, min_step_tile=128)
    out2 = jax.block_until_ready(out2)
    ref2 = decoder_reference(x2, params)
    assert out2.shape == (N2, 2 * num_tx_ant)
    assert jnp.allclose(out2, ref2, atol=1e-5, rtol=1e-5), "mismatch (tiled)"

    print("KERNEL_OK")
</pallas_src>

<mosaic_0001>
module attributes {stable_mosaic.version = 11 : i64} {
  func.func @_decoder_kernel(%arg0: i32, %arg1: memref<4x256xf32, #tpu.memory_space<vmem>>, %arg2: memref<8x4xf32, #tpu.memory_space<vmem>>, %arg3: memref<8x1xf32, #tpu.memory_space<vmem>>, %arg4: memref<16x8xf32, #tpu.memory_space<vmem>>, %arg5: memref<16x1xf32, #tpu.memory_space<vmem>>, %arg6: memref<32x16xf32, #tpu.memory_space<vmem>>, %arg7: memref<32x1xf32, #tpu.memory_space<vmem>>, %arg8: memref<8x32xf32, #tpu.memory_space<vmem>>, %arg9: memref<8x1xf32, #tpu.memory_space<vmem>>, %arg10: memref<8x256xf32, #tpu.memory_space<vmem>>) attributes {dimension_semantics = [#tpu.dimension_semantics<parallel>], iteration_bounds = array<i64: 1>, scalar_prefetch = 0 : i64, scratch_operands = 0 : i64, tpu.core_type = #tpu.core_type<tc>, window_params = [{transform_indices = @transform_0, window_bounds = array<i64: 4, 256>}, {pipeline_mode = #tpu.pipeline_mode<synchronous>, transform_indices = @transform_1, window_bounds = array<i64: 8, 4>}, {pipeline_mode = #tpu.pipeline_mode<synchronous>, transform_indices = @transform_2, window_bounds = array<i64: 8, 1>}, {pipeline_mode = #tpu.pipeline_mode<synchronous>, transform_indices = @transform_3, window_bounds = array<i64: 16, 8>}, {pipeline_mode = #tpu.pipeline_mode<synchronous>, transform_indices = @transform_4, window_bounds = array<i64: 16, 1>}, {pipeline_mode = #tpu.pipeline_mode<synchronous>, transform_indices = @transform_5, window_bounds = array<i64: 32, 16>}, {pipeline_mode = #tpu.pipeline_mode<synchronous>, transform_indices = @transform_6, window_bounds = array<i64: 32, 1>}, {pipeline_mode = #tpu.pipeline_mode<synchronous>, transform_indices = @transform_7, window_bounds = array<i64: 8, 32>}, {pipeline_mode = #tpu.pipeline_mode<synchronous>, transform_indices = @transform_8, window_bounds = array<i64: 8, 1>}, {transform_indices = @transform_9, window_bounds = array<i64: 8, 256>}]} {
    %c0 = arith.constant 0 : index
    %c0_0 = arith.constant 0 : index
    %0 = vector.load %arg1[%c0, %c0_0] : memref<4x256xf32, #tpu.memory_space<vmem>>, vector<4x256xf32>
    %c0_1 = arith.constant 0 : index
    %c0_2 = arith.constant 0 : index
    %1 = vector.load %arg2[%c0_1, %c0_2] : memref<8x4xf32, #tpu.memory_space<vmem>>, vector<8x4xf32>
    %cst = arith.constant dense<0.000000e+00> : vector<8x256xf32>
    %2 = tpu.matmul %1, %0, %cst {dimension_numbers = #tpu.dot_dimension_numbers<[1], [0], [0], [1], [0, 0, 1, 1], [], []>} : vector<8x4xf32>, vector<4x256xf32>, vector<8x256xf32> -> vector<8x256xf32>
    %c0_3 = arith.constant 0 : index
    %c0_4 = arith.constant 0 : index
    %3 = vector.load %arg3[%c0_3, %c0_4] : memref<8x1xf32, #tpu.memory_space<vmem>>, vector<8x1xf32>
    %4 = vector.broadcast %3 : vector<8x1xf32> to vector<8x256xf32>
    %5 = arith.addf %2, %4 : vector<8x256xf32>
    %6 = math.tanh %5 : vector<8x256xf32>
    %c0_5 = arith.constant 0 : index
    %c0_6 = arith.constant 0 : index
    %7 = vector.load %arg4[%c0_5, %c0_6] : memref<16x8xf32, #tpu.memory_space<vmem>>, vector<16x8xf32>
    %cst_7 = arith.constant dense<0.000000e+00> : vector<16x256xf32>
    %8 = tpu.matmul %7, %6, %cst_7 {dimension_numbers = #tpu.dot_dimension_numbers<[1], [0], [0], [1], [0, 0, 1, 1], [], []>} : vector<16x8xf32>, vector<8x256xf32>, vector<16x256xf32> -> vector<16x256xf32>
    %c0_8 = arith.constant 0 : index
    %c0_9 = arith.constant 0 : index
    %9 = vector.load %arg5[%c0_8, %c0_9] : memref<16x1xf32, #tpu.memory_space<vmem>>, vector<16x1xf32>
    %10 = vector.broadcast %9 : vector<16x1xf32> to vector<16x256xf32>
    %11 = arith.addf %8, %10 : vector<16x256xf32>
    %12 = math.tanh %11 : vector<16x256xf32>
    %c0_10 = arith.constant 0 : index
    %c0_11 = arith.constant 0 : index
    %13 = vector.load %arg6[%c0_10, %c0_11] : memref<32x16xf32, #tpu.memory_space<vmem>>, vector<32x16xf32>
    %cst_12 = arith.constant dense<0.000000e+00> : vector<32x256xf32>
    %14 = tpu.matmul %13, %12, %cst_12 {dimension_numbers = #tpu.dot_dimension_numbers<[1], [0], [0], [1], [0, 0, 1, 1], [], []>} : vector<32x16xf32>, vector<16x256xf32>, vector<32x256xf32> -> vector<32x256xf32>
    %c0_13 = arith.constant 0 : index
    %c0_14 = arith.constant 0 : index
    %15 = vector.load %arg7[%c0_13, %c0_14] : memref<32x1xf32, #tpu.memory_space<vmem>>, vector<32x1xf32>
    %16 = vector.broadcast %15 : vector<32x1xf32> to vector<32x256xf32>
    %17 = arith.addf %14, %16 : vector<32x256xf32>
    %18 = math.tanh %17 : vector<32x256xf32>
    %c0_15 = arith.constant 0 : index
    %c0_16 = arith.constant 0 : index
    %19 = vector.load %arg8[%c0_15, %c0_16] : memref<8x32xf32, #tpu.memory_space<vmem>>, vector<8x32xf32>
    %cst_17 = arith.constant dense<0.000000e+00> : vector<8x256xf32>
    %20 = tpu.matmul %19, %18, %cst_17 {dimension_numbers = #tpu.dot_dimension_numbers<[1], [0], [0], [1], [0, 0, 1, 1], [], []>} : vector<8x32xf32>, vector<32x256xf32>, vector<8x256xf32> -> vector<8x256xf32>
    %c0_18 = arith.constant 0 : index
    %c0_19 = arith.constant 0 : index
    %21 = vector.load %arg9[%c0_18, %c0_19] : memref<8x1xf32, #tpu.memory_space<vmem>>, vector<8x1xf32>
    %22 = vector.broadcast %21 : vector<8x1xf32> to vector<8x256xf32>
    %23 = arith.addf %20, %22 : vector<8x256xf32>
    %24 = math.tanh %23 : vector<8x256xf32>
    %c0_20 = arith.constant 0 : index
    %c0_21 = arith.constant 0 : index
    %25 = vector.load %arg10[%c0_20, %c0_21] : memref<8x256xf32, #tpu.memory_space<vmem>>, vector<8x256xf32>
    tpu.vector_store %arg10[%c0_20, %c0_21], %24 {strides = array<i32>} : memref<8x256xf32, #tpu.memory_space<vmem>>, vector<8x256xf32>,
    return
  }
  func.func @transform_0(%arg0: i32) -> (i32, i32) {
    %c0_i32 = arith.constant 0 : i32
    %c0_i32_0 = arith.constant 0 : i32
    return %c0_i32, %arg0 : i32, i32
  }
  func.func @transform_1(%arg0: i32) -> (i32, i32) {
    %c0_i32 = arith.constant 0 : i32
    %c0_i32_0 = arith.constant 0 : i32
    %c0_i32_1 = arith.constant 0 : i32
    return %c0_i32, %c0_i32_0 : i32, i32
  }
  func.func @transform_2(%arg0: i32) -> (i32, i32) {
    %c0_i32 = arith.constant 0 : i32
    %c0_i32_0 = arith.constant 0 : i32
    %c0_i32_1 = arith.constant 0 : i32
    return %c0_i32, %c0_i32_0 : i32, i32
  }
  func.func @transform_3(%arg0: i32) -> (i32, i32) {
    %c0_i32 = arith.constant 0 : i32
    %c0_i32_0 = arith.constant 0 : i32
    %c0_i32_1 = arith.constant 0 : i32
    return %c0_i32, %c0_i32_0 : i32, i32
  }
  func.func @transform_4(%arg0: i32) -> (i32, i32) {
    %c0_i32 = arith.constant 0 : i32
    %c0_i32_0 = arith.constant 0 : i32
    %c0_i32_1 = arith.constant 0 : i32
    return %c0_i32, %c0_i32_0 : i32, i32
  }
  func.func @transform_5(%arg0: i32) -> (i32, i32) {
    %c0_i32 = arith.constant 0 : i32
    %c0_i32_0 = arith.constant 0 : i32
    %c0_i32_1 = arith.constant 0 : i32
    return %c0_i32, %c0_i32_0 : i32, i32
  }
  func.func @transform_6(%arg0: i32) -> (i32, i32) {
    %c0_i32 = arith.constant 0 : i32
    %c0_i32_0 = arith.constant 0 : i32
    %c0_i32_1 = arith.constant 0 : i32
    return %c0_i32, %c0_i32_0 : i32, i32
  }
  func.func @transform_7(%arg0: i32) -> (i32, i32) {
    %c0_i32 = arith.constant 0 : i32
    %c0_i32_0 = arith.constant 0 : i32
    %c0_i32_1 = arith.constant 0 : i32
    return %c0_i32, %c0_i32_0 : i32, i32
  }
  func.func @transform_8(%arg0: i32) -> (i32, i32) {
    %c0_i32 = arith.constant 0 : i32
    %c0_i32_0 = arith.constant 0 : i32
    %c0_i32_1 = arith.constant 0 : i32
    return %c0_i32, %c0_i32_0 : i32, i32
  }
  func.func @transform_9(%arg0: i32) -> (i32, i32) {
    %c0_i32 = arith.constant 0 : i32
    %c0_i32_0 = arith.constant 0 : i32
    return %c0_i32, %arg0 : i32, i32
  }
}

</mosaic_0001>

<llo_original>
// kernel: tpu_custom_call.1
$region0: #{tpu_custom_call.1}
  #allocation0 [shape = 'u32[]', space=smem, size = 0x4, offset = 0x4, fixed_abs, tag = 'smem constant byte address 0x4 - core index']
  #allocation1 [shape = 'u32[72,128]{1,0:T(1,128)}', space=vmem, size = 0x9000, scoped, tag = 'internal scratch']
  %s0 = inlined_call_operand.vmem [shape: f32[4,256], index: 0, kind: input, shape index: {}]
  %s1 = inlined_call_operand.vmem [shape: f32[8,4], index: 1, kind: input, shape index: {}]
  %s2 = inlined_call_operand.vmem [shape: f32[8,1], index: 2, kind: input, shape index: {}]
  %s3 = inlined_call_operand.vmem [shape: f32[16,8], index: 3, kind: input, shape index: {}]
  %s4 = inlined_call_operand.vmem [shape: f32[16,1], index: 4, kind: input, shape index: {}]
  %s5 = inlined_call_operand.vmem [shape: f32[32,16], index: 5, kind: input, shape index: {}]
  %s6 = inlined_call_operand.vmem [shape: f32[32,1], index: 6, kind: input, shape index: {}]
  %s7 = inlined_call_operand.vmem [shape: f32[8,32], index: 7, kind: input, shape index: {}]
  %s8 = inlined_call_operand.vmem [shape: f32[8,1], index: 8, kind: input, shape index: {}]
  %s9 = inlined_call_operand.hbm [shape: f32[8,256], index: 9, kind: output, shape index: {}]
  %s10 = sld [smem:[#allocation0]]
  $region46: #{tpu_custom_call.1} parent=0
    _
  %s12 = ssub.s32 1, %s10
  %s13 = scalar_select 0, %s12, %s10
  $region1: #{tpu_custom_call.1} parent=0
    #allocation2 [shape = 'u8[8192]{0}', space=vmem, size = 0x2000, scoped, tag = 'output window, operand 0, single buffered']
    #allocation3 [shape = 's32[1]{0}', space=sflag, size = 0x4, scoped, tag = 'scoped memory for tpu_custom_call.1']
    %14 = vsyncpa [#allocation3], 0
    // Predicated region
    $region2: #{tpu_custom_call.1} parent=1 // pred_check
      _
    $region3: #{tpu_custom_call.1} parent=1 // pred_check_branch
      %16 = sbr.rel (0) target = $region5
    $region4: #{tpu_custom_call.1} parent=1 // pred_region
      _
    $region5: #{tpu_custom_call.1} parent=1 // pred_fallthru
      _
    // Predicated region
    $region6: #{tpu_custom_call.1} parent=1 // pred_check
      _
    $region7: #{tpu_custom_call.1} parent=1 // pred_check_branch
      %18 = sbr.rel (0) target = $region9
    $region8: #{tpu_custom_call.1} parent=1 // pred_region
      _
    $region9: #{tpu_custom_call.1} parent=1 // pred_fallthru
      _
    // Predicated region
    $region10: #{tpu_custom_call.1} parent=1 // pred_check
      _
    $region11: #{tpu_custom_call.1} parent=1 // pred_check_branch
      %20 = sbr.rel (0) target = $region13
    $region12: #{tpu_custom_call.1} parent=1 // pred_region
      _
    $region13: #{tpu_custom_call.1} parent=1 // pred_fallthru
      _
    // Predicated region
    $region14: #{tpu_custom_call.1} parent=1 // pred_check
      _
    $region15: #{tpu_custom_call.1} parent=1 // pred_check_branch
      %22 = sbr.rel (0) target = $region17
    $region16: #{tpu_custom_call.1} parent=1 // pred_region
      _
    $region17: #{tpu_custom_call.1} parent=1 // pred_fallthru
      _
    // Predicated region
    $region18: #{tpu_custom_call.1} parent=1 // pred_check
      _
    $region19: #{tpu_custom_call.1} parent=1 // pred_check_branch
      %24 = sbr.rel (0) target = $region21
    $region20: #{tpu_custom_call.1} parent=1 // pred_region
      _
    $region21: #{tpu_custom_call.1} parent=1 // pred_fallthru
      _
    // Predicated region
    $region22: #{tpu_custom_call.1} parent=1 // pred_check
      _
    $region23: #{tpu_custom_call.1} parent=1 // pred_check_branch
      %26 = sbr.rel (0) target = $region25
    $region24: #{tpu_custom_call.1} parent=1 // pred_region
      _
    $region25: #{tpu_custom_call.1} parent=1 // pred_fallthru
      _
    // Predicated region
    $region26: #{tpu_custom_call.1} parent=1 // pred_check
      _
    $region27: #{tpu_custom_call.1} parent=1 // pred_check_branch
      %28 = sbr.rel (0) target = $region29
    $region28: #{tpu_custom_call.1} parent=1 // pred_region
      _
    $region29: #{tpu_custom_call.1} parent=1 // pred_fallthru
      _
    // Predicated region
    $region30: #{tpu_custom_call.1} parent=1 // pred_check
      _
    $region31: #{tpu_custom_call.1} parent=1 // pred_check_branch
      %30 = sbr.rel (0) target = $region33
    $region32: #{tpu_custom_call.1} parent=1 // pred_region
      _
    $region33: #{tpu_custom_call.1} parent=1 // pred_fallthru
      _
    // Predicated region
    $region34: #{tpu_custom_call.1} parent=1 // pred_check
      _
    $region35: #{tpu_custom_call.1} parent=1 // pred_check_branch
      %32 = sbr.rel (0) target = $region37
    $region36: #{tpu_custom_call.1} parent=1 // pred_region
      _
    $region37: #{tpu_custom_call.1} parent=1 // pred_fallthru
      _
    %v33 = vld [vmem:[%s0] sm:$0xff]
    %v34 = vld [vmem:[%s1] sm:$0xff]
    %v35 = vld [vmem:[%s2] sm:$0xff]
    %37 = vset.pattern.permute.xlu0 0
    %38 = vperm.xlu0 %37, %v35
    %v39 = vpop.permute.xlu0 %38
    %42 = vst [vmem:[#allocation1] ss:$2 sm:$0xff] %v33
    %v43 = vld.sshfl [vmem:[#allocation1] sm:$0xff pattern:$0x75316420]
    %v44 = vld.sshfl [vmem:[#allocation1 + $0x8] sm:$0xff pattern:$0x75316420]
    %vm45 = vcmask 31744
    %v47 = vsel %vm45, %v34, 0
    %vm49 = vcmask 1043456
    %v50 = vsel %vm49, %v43, 0
    %v52 = vsel %vm49, %v44, 0
    %54 = vmatpush.msra.mxu0 0.0
    %55 = vmatpush.msra.mxu0 0.0
    %56 = vmatpush.msra.mxu0 0.0
    %57 = vmatpush.msra.mxu0 0.0
    %58 = vmatpush.msra.mxu0 0.0
    %59 = vmatpush.msra.mxu0 0.0
    %60 = vmatpush.msra.mxu0 0.0
    %61 = vmatpush.msra.mxu0 0.0
    %62 = vmatpush.msra.mxu0 0.0
    %63 = vmatpush.msra.mxu0 0.0
    %64 = vmatpush.msra.mxu0 0.0
    %65 = vmatpush.msra.mxu0 0.0
    %66 = vmatpush.msra.mxu0 0.0
    %67 = vmatpush.msra.mxu0 0.0
    %68 = vmatpush.msra.mxu0 0.0
    %69 = vmatpush.msra.mxu0 %v50
    %70 = vmatmul.f32.gmra.mxu0 %v47
    %v71 = vpop.f32.mrf.mxu0
    %v72 = vadd.f32 %v39, %v71
    %73 = vdwg.mxu0
    %74 = vmatpush.msra.mxu0 0.0
    %75 = vmatpush.msra.mxu0 0.0
    %76 = vmatpush.msra.mxu0 0.0
    %77 = vmatpush.msra.mxu0 0.0
    %78 = vmatpush.msra.mxu0 0.0
    %79 = vmatpush.msra.mxu0 0.0
    %80 = vmatpush.msra.mxu0 0.0
    %81 = vmatpush.msra.mxu0 0.0
    %82 = vmatpush.msra.mxu0 0.0
    %83 = vmatpush.msra.mxu0 0.0
    %84 = vmatpush.msra.mxu0 0.0
    %85 = vmatpush.msra.mxu0 0.0
    %86 = vmatpush.msra.mxu0 0.0
    %87 = vmatpush.msra.mxu0 0.0
    %88 = vmatpush.msra.mxu0 0.0
    %89 = vmatpush.msra.mxu0 %v52
    %90 = vmatmul.f32.gmra.mxu0 %v47
    %v91 = vpop.f32.mrf.mxu0
    %v92 = vadd.f32 %v39, %v91
    %93 = vdwg.mxu0
    %v94 = vtanh.pop %v72
    %v95 = vtanh.pop %v92
    %v96 = vld [vmem:[%s3] sm:$0xff]
    %v97 = vld [vmem:[%s3 + $0x8] sm:$0xff]
    %v98 = vld [vmem:[%s4] sm:$0xff]
    %v99 = vld [vmem:[%s4 + $0x8] sm:$0xff]
    %101 = vset.pattern.permute.xlu0 0
    %102 = vperm.xlu0 %101, %v98
    %v103 = vpop.permute.xlu0 %102
    %106 = vset.pattern.permute.xlu0 0
    %107 = vperm.xlu0 %106, %v99
    %v108 = vpop.permute.xlu0 %107
    %vm110 = vcmask 64512
    %v112 = vsel %vm110, %v96, 0
    %v115 = vsel %vm110, %v97, 0
    %117 = vmatpush.msra.mxu0 0.0
    %118 = vmatpush.msra.mxu0 0.0
    %119 = vmatpush.msra.mxu0 0.0
    %120 = vmatpush.msra.mxu0 0.0
    %121 = vmatpush.msra.mxu0 0.0
    %122 = vmatpush.msra.mxu0 0.0
    %123 = vmatpush.msra.mxu0 0.0
    %124 = vmatpush.msra.mxu0 0.0
    %125 = vmatpush.msra.mxu0 0.0
    %126 = vmatpush.msra.mxu0 0.0
    %127 = vmatpush.msra.mxu0 0.0
    %128 = vmatpush.msra.mxu0 0.0
    %129 = vmatpush.msra.mxu0 0.0
    %130 = vmatpush.msra.mxu0 0.0
    %131 = vmatpush.msra.mxu0 0.0
    %132 = vmatpush.msra.mxu0 %v94
    %133 = vmatmul.f32.gmra.mxu0 %v112
    %v134 = vpop.f32.mrf.mxu0
    %v135 = vadd.f32 %v103, %v134
    %136 = vmatmul.f32.gmra.mxu0 %v115
    %v137 = vpop.f32.mrf.mxu0
    %v138 = vadd.f32 %v108, %v137
    %139 = vdwg.mxu0
    %140 = vmatpush.msra.mxu0 0.0
    %141 = vmatpush.msra.mxu0 0.0
    %142 = vmatpush.msra.mxu0 0.0
    %143 = vmatpush.msra.mxu0 0.0
    %144 = vmatpush.msra.mxu0 0.0
    %145 = vmatpush.msra.mxu0 0.0
    %146 = vmatpush.msra.mxu0 0.0
    %147 = vmatpush.msra.mxu0 0.0
    %148 = vmatpush.msra.mxu0 0.0
    %149 = vmatpush.msra.mxu0 0.0
    %150 = vmatpush.msra.mxu0 0.0
    %151 = vmatpush.msra.mxu0 0.0
    %152 = vmatpush.msra.mxu0 0.0
    %153 = vmatpush.msra.mxu0 0.0
    %154 = vmatpush.msra.mxu0 0.0
    %155 = vmatpush.msra.mxu0 %v95
    %156 = vmatmul.f32.gmra.mxu0 %v112
    %v157 = vpop.f32.mrf.mxu0
    %v158 = vadd.f32 %v103, %v157
    %159 = vmatmul.f32.gmra.mxu0 %v115
    %v160 = vpop.f32.mrf.mxu0
    %v161 = vadd.f32 %v108, %v160
    %162 = vdwg.mxu0
    %v163 = vtanh.pop %v135
    %v164 = vtanh.pop %v158
    %v165 = vtanh.pop %v138
    %v166 = vtanh.pop %v161
    %v167 = vld [vmem:[%s5] sm:$0xff]
    %v168 = vld [vmem:[%s5 + $0x8] sm:$0xff]
    %v169 = vld [vmem:[%s5 + $0x10] sm:$0xff]
    %v170 = vld [vmem:[%s5 + $0x18] sm:$0xff]
    %v171 = vld [vmem:[%s6] sm:$0xff]
    %v172 = vld [vmem:[%s6 + $0x8] sm:$0xff]
    %v173 = vld [vmem:[%s6 + $0x10] sm:$0xff]
    %v174 = vld [vmem:[%s6 + $0x18] sm:$0xff]
    %176 = vset.pattern.permute.xlu0 0
    %177 = vperm.xlu0 %176, %v171
    %v178 = vpop.permute.xlu0 %177
    %181 = vset.pattern.permute.xlu0 0
    %182 = vperm.xlu0 %181, %v172
    %v183 = vpop.permute.xlu0 %182
    %186 = vset.pattern.permute.xlu0 0
    %187 = vperm.xlu0 %186, %v173
    %v188 = vpop.permute.xlu0 %187
    %191 = vset.pattern.permute.xlu0 0
    %192 = vperm.xlu0 %191, %v174
    %v193 = vpop.permute.xlu0 %192
    %vm195 = vcmask 130048
    %v197 = vsel %vm195, %v167, 0
    %v200 = vsel %vm195, %v168, 0
    %v203 = vsel %vm195, %v169, 0
    %v206 = vsel %vm195, %v170, 0
    %208 = vmatpush.msra.mxu0 0.0
    %209 = vmatpush.msra.mxu0 0.0
    %210 = vmatpush.msra.mxu0 0.0
    %211 = vmatpush.msra.mxu0 0.0
    %212 = vmatpush.msra.mxu0 0.0
    %213 = vmatpush.msra.mxu0 0.0
    %214 = vmatpush.msra.mxu0 0.0
    %215 = vmatpush.msra.mxu0 0.0
    %216 = vmatpush.msra.mxu0 0.0
    %217 = vmatpush.msra.mxu0 0.0
    %218 = vmatpush.msra.mxu0 0.0
    %219 = vmatpush.msra.mxu0 0.0
    %220 = vmatpush.msra.mxu0 0.0
    %221 = vmatpush.msra.mxu0 0.0
    %222 = vmatpush.msra.mxu0 %v165
    %223 = vmatpush.msra.mxu0 %v163
    %224 = vmatmul.f32.gmra.mxu0 %v197
    %v225 = vpop.f32.mrf.mxu0
    %v226 = vadd.f32 %v178, %v225
    %227 = vmatmul.f32.gmra.mxu0 %v200
    %v228 = vpop.f32.mrf.mxu0
    %v229 = vadd.f32 %v183, %v228
    %230 = vmatmul.f32.gmra.mxu0 %v203
    %v231 = vpop.f32.mrf.mxu0
    %v232 = vadd.f32 %v188, %v231
    %233 = vmatmul.f32.gmra.mxu0 %v206
    %v234 = vpop.f32.mrf.mxu0
    %v235 = vadd.f32 %v193, %v234
    %236 = vdwg.mxu0
    %237 = vmatpush.msra.mxu0 0.0
    %238 = vmatpush.msra.mxu0 0.0
    %239 = vmatpush.msra.mxu0 0.0
    %240 = vmatpush.msra.mxu0 0.0
    %241 = vmatpush.msra.mxu0 0.0
    %242 = vmatpush.msra.mxu0 0.0
    %243 = vmatpush.msra.mxu0 0.0
    %244 = vmatpush.msra.mxu0 0.0
    %245 = vmatpush.msra.mxu0 0.0
    %246 = vmatpush.msra.mxu0 0.0
    %247 = vmatpush.msra.mxu0 0.0
    %248 = vmatpush.msra.mxu0 0.0
    %249 = vmatpush.msra.mxu0 0.0
    %250 = vmatpush.msra.mxu0 0.0
    %251 = vmatpush.msra.mxu0 %v166
    %252 = vmatpush.msra.mxu0 %v164
    %253 = vmatmul.f32.gmra.mxu0 %v197
    %v254 = vpop.f32.mrf.mxu0
    %v255 = vadd.f32 %v178, %v254
    %256 = vmatmul.f32.gmra.mxu0 %v200
    %v257 = vpop.f32.mrf.mxu0
    %v258 = vadd.f32 %v183, %v257
    %259 = vmatmul.f32.gmra.mxu0 %v203
    %v260 = vpop.f32.mrf.mxu0
    %v261 = vadd.f32 %v188, %v260
    %262 = vmatmul.f32.gmra.mxu0 %v206
    %v263 = vpop.f32.mrf.mxu0
    %v264 = vadd.f32 %v193, %v263
    %265 = vdwg.mxu0
    %v266 = vtanh.pop %v226
    %v267 = vtanh.pop %v255
    %v268 = vtanh.pop %v229
    %v269 = vtanh.pop %v258
    %v270 = vtanh.pop %v232
    %v271 = vtanh.pop %v261
    %v272 = vtanh.pop %v235
    %v273 = vtanh.pop %v264
    %v274 = vld [vmem:[%s7] sm:$0xff]
    %v275 = vld [vmem:[%s8] sm:$0xff]
    %277 = vset.pattern.permute.xlu0 0
    %278 = vperm.xlu0 %277, %v275
    %v279 = vpop.permute.xlu0 %278
    %vm281 = vcmask 261120
    %v283 = vsel %vm281, %v274, 0
    %285 = vmatpush.msra.mxu0 0.0
    %286 = vmatpush.msra.mxu0 0.0
    %287 = vmatpush.msra.mxu0 0.0
    %288 = vmatpush.msra.mxu0 0.0
    %289 = vmatpush.msra.mxu0 0.0
    %290 = vmatpush.msra.mxu0 0.0
    %291 = vmatpush.msra.mxu0 0.0
    %292 = vmatpush.msra.mxu0 0.0
    %293 = vmatpush.msra.mxu0 0.0
    %294 = vmatpush.msra.mxu0 0.0
    %295 = vmatpush.msra.mxu0 0.0
    %296 = vmatpush.msra.mxu0 0.0
    %297 = vmatpush.msra.mxu0 %v272
    %298 = vmatpush.msra.mxu0 %v270
    %299 = vmatpush.msra.mxu0 %v268
    %300 = vmatpush.msra.mxu0 %v266
    %301 = vmatmul.f32.gmra.mxu0 %v283
    %v302 = vpop.f32.mrf.mxu0
    %v303 = vadd.f32 %v279, %v302
    %304 = vdwg.mxu0
    %305 = vmatpush.msra.mxu0 0.0
    %306 = vmatpush.msra.mxu0 0.0
    %307 = vmatpush.msra.mxu0 0.0
    %308 = vmatpush.msra.mxu0 0.0
    %309 = vmatpush.msra.mxu0 0.0
    %310 = vmatpush.msra.mxu0 0.0
    %311 = vmatpush.msra.mxu0 0.0
    %312 = vmatpush.msra.mxu0 0.0
    %313 = vmatpush.msra.mxu0 0.0
    %314 = vmatpush.msra.mxu0 0.0
    %315 = vmatpush.msra.mxu0 0.0
    %316 = vmatpush.msra.mxu0 0.0
    %317 = vmatpush.msra.mxu0 %v273
    %318 = vmatpush.msra.mxu0 %v271
    %319 = vmatpush.msra.mxu0 %v269
    %320 = vmatpush.msra.mxu0 %v267
    %321 = vmatmul.f32.gmra.mxu0 %v283
    %v322 = vpop.f32.mrf.mxu0
    %v323 = vadd.f32 %v279, %v322
    %324 = vdwg.mxu0
    %v325 = vtanh.pop %v303
    %v326 = vtanh.pop %v323
    %327 = vst [vmem:[#allocation2] sm:$0xff] %v325
    %328 = vst [vmem:[#allocation2 + $0x8] sm:$0xff] %v326
    // Predicated region
    $region38: #{tpu_custom_call.1} parent=1 // pred_check
      _
    $region39: #{tpu_custom_call.1} parent=1 // pred_check_branch
      %330 = sbr.rel (0) target = $region41
    $region40: #{tpu_custom_call.1} parent=1 // pred_region
      %332 = vsyncadd [#allocation3], 0
      %s334 = sshll.u32 [#allocation2], 4
      %s335 = int_to_ptr.vmem [resolvable:$true] %s334
      %s336 = sshll.u32 %s9, 4
      %s337 = int_to_ptr.hbm [resolvable:$true] %s336
      %339 = dma.vmem_to_hbm [thread:$0]  %s335, 256, %s337, [#allocation3]
    $region41: #{tpu_custom_call.1} parent=1 // pred_fallthru
      _
    // Predicated region
    $region42: #{tpu_custom_call.1} parent=1 // pred_check
      _
    $region43: #{tpu_custom_call.1} parent=1 // pred_check_branch
      %341 = sbr.rel (0) target = $region45
    $region44: #{tpu_custom_call.1} parent=1 // pred_region
      %343 = dma.done [#allocation3], 256
    $region45: #{tpu_custom_call.1} parent=1 // pred_fallthru
      _
    %344 = vsyncpa [#allocation3], 1

</llo_original>
